<compile_context>
chip_gen: v5e
topology: v5e:2x2
jax: 0.10.0
libtpu: 0.0.40
codegen_flags: <defaults>
</compile_context>

<pallas_src>
import jax
import jax.numpy as jnp
from jax import lax
from jax.experimental import pallas as pl
from jax.experimental.pallas import tpu as pltpu


def _round_up(x, m):
    return ((x + m - 1) // m) * m


def _make_conv_embed_kernel(ts, th, offs):
    """Builds the kernel for one (batch, spatial-tile) grid cell.

    w_ref:  (T2, E, K16) bf16  per-super-tap weights, VMEM-pinned
    b_ref:  (E, 1)       f32   bias, VMEM-pinned
    xm_ref: (K16, ts)    bf16  main space-to-depth tile (extended spatial cols)
    xh_ref: (K16, th)    bf16  halo: the `th` columns following the main tile
    o_ref:  (E, ts)            lane-dense output tile (already NCHW-ordered)
    xs_ref: (K16, ts+th) bf16  VMEM scratch stitching main + halo
    """
    def kernel(w_ref, b_ref, xm_ref, xh_ref, o_ref, xs_ref):
        xs_ref[:, :ts] = xm_ref[...]
        xs_ref[:, ts:] = xh_ref[...]
        acc = jnp.zeros(o_ref.shape, jnp.float32)
        for t, off in enumerate(offs):
            # static lane-offset slice of the stitched tile; each super-tap is
            # a (E, K16) x (K16, ts) MXU matmul accumulated in f32.
            acc += jnp.dot(w_ref[t], xs_ref[:, off:off + ts],
                           preferred_element_type=jnp.float32)
        o_ref[...] = (acc + b_ref[...]).astype(o_ref.dtype)

    return kernel


def conv_embed_forward(x, weight, bias, *, stride=4, padding=2, block_s=4096,
                       compute_dtype=jnp.bfloat16, out_dtype=jnp.bfloat16):
    """ConvEmbed.forward with norm_layer=None.

    x:      (B, C, H, W)   NCHW float32
    weight: (E, C, kh, kw) conv weight (PyTorch layout)
    bias:   (E,)           conv bias
    returns (B, E, Ho, Wo) NCHW in `out_dtype` (bf16 by default per perf review)
    """
    B, C, H, W = x.shape
    E, Cw, kh, kw = weight.shape
    assert Cw == C
    st = stride

    Ho = (H + 2 * padding - kh) // st + 1
    Wo = (W + 2 * padding - kw) // st + 1
    Ty = -(-kh // st)                 # super-taps along rows (= 2 for 7/4)
    Tx = -(-kw // st)                 # super-taps along cols (= 2 for 7/4)
    HoT, WoT = Ho + Ty - 1, Wo + Tx - 1
    Hs, Ws = st * HoT, st * WoT
    K16 = C * st * st                 # channels after space-to-depth (= 48)
    Sx = Ho * WoT                     # "extended" spatial (Tx-1 junk cols/row)

    # ---- glue: pad + cast + stride-`st` space-to-depth (input-sized pass) ----
    xpad = jnp.pad(x.astype(compute_dtype),
                   ((0, 0), (0, 0),
                    (padding, max(0, Hs - H - padding)),
                    (padding, max(0, Ws - W - padding))))[:, :, :Hs, :Ws]
    sdf = (xpad.reshape(B, C, HoT, st, WoT, st)
               .transpose(0, 1, 3, 5, 2, 4)          # (B, C, dy, dx, Y, X)
               .reshape(B, K16, HoT * WoT))

    # ---- tiling: lane-dense output tiles over the extended spatial axis ----
    offs = [ty * WoT + tx for ty in range(Ty) for tx in range(Tx)]
    max_off = max(offs)
    th = max(128, _round_up(max(1, max_off), 128))    # halo width, lane-aligned
    ts_target = max(th, _round_up(block_s, th))
    n_s = max(1, -(-Sx // ts_target))
    if B * n_s < 2 and Sx > th:
        n_s = 2                                        # keep both v7x TCs busy
    ts = _round_up(-(-Sx // n_s), th)
    n_s = -(-Sx // ts)
    assert ts % th == 0
    sp_pad = n_s * ts + th
    sdf = jnp.pad(sdf, ((0, 0), (0, 0), (0, sp_pad - HoT * WoT)))

    # ---- per-super-tap weights (T2, E, K16); K16 ordered (c, dy, dx) ----
    wp = jnp.zeros((E, C, Ty * st, Tx * st), compute_dtype)
    wp = wp.at[:, :, :kh, :kw].set(weight.astype(compute_dtype))
    wt = (wp.reshape(E, C, Ty, st, Tx, st)
            .transpose(2, 4, 0, 1, 3, 5)
            .reshape(Ty * Tx, E, K16))
    b2d = bias.reshape(E, 1).astype(jnp.float32)

    kernel = _make_conv_embed_kernel(ts, th, offs)
    out_ext = pl.pallas_call(
        kernel,
        out_shape=jax.ShapeDtypeStruct((B, E, n_s * ts), out_dtype),
        grid=(B, n_s),
        in_specs=[
            # weight / bias pinned: constant block index -> VMEM-resident
            pl.BlockSpec((Ty * Tx, E, K16), lambda b, si: (0, 0, 0)),
            pl.BlockSpec((E, 1), lambda b, si: (0, 0)),
            # main space-to-depth tile (default double buffering)
            pl.BlockSpec((None, K16, ts), lambda b, si: (b, 0, si)),
            # halo: first `th` columns after this tile, same HBM array
            pl.BlockSpec((None, K16, th),
                         lambda b, si: (b, 0, (si + 1) * (ts // th))),
        ],
        out_specs=pl.BlockSpec((None, E, ts), lambda b, si: (b, 0, si)),
        scratch_shapes=[pltpu.VMEM((K16, ts + th), compute_dtype)],
        compiler_params=pltpu.CompilerParams(
            dimension_semantics=("parallel", "parallel")),
    )(wt, b2d, sdf, sdf)

    # drop spatial padding + the per-row junk column (output-sized copy).
    # TODO(synk): fold this compaction into the kernel epilogue if the extra
    # output-sized XLA copy ever shows up in profiles.
    out = out_ext[:, :, :Sx].reshape(B, E, Ho, WoT)[:, :, :, :Wo]
    # norm_layer is None -> 'b c h w -> b (h w) c -> b c h w' is identity.
    return out


if __name__ == "__main__":
    key = jax.random.PRNGKey(0)
    k_x, k_w, k_b = jax.random.split(key, 3)

    B, C, H, W = 2, 3, 16, 16
    E, kh, kw = 64, 7, 7
    stride, padding = 4, 2

    x = jax.random.normal(k_x, (B, C, H, W), dtype=jnp.float32)
    # deterministic "kaiming-uniform-ish" init
    fan_in = C * kh * kw
    bound = 1.0 / (fan_in ** 0.5)
    weight = jax.random.uniform(k_w, (E, C, kh, kw), jnp.float32, -bound, bound)
    bias = jax.random.uniform(k_b, (E,), jnp.float32, -bound, bound)

    fwd = jax.jit(lambda a, w, b: conv_embed_forward(a, w, b,
                                                     stride=stride,
                                                     padding=padding))
    out = jax.block_until_ready(fwd(x, weight, bias))

    # reference: XLA conv on the same bf16-rounded inputs, f32 accumulation
    xr = x.astype(jnp.bfloat16).astype(jnp.float32)
    wr = weight.astype(jnp.bfloat16).astype(jnp.float32)
    ref = lax.conv_general_dilated(
        xr, wr, window_strides=(stride, stride),
        padding=((padding, padding), (padding, padding)),
        dimension_numbers=("NCHW", "OIHW", "NCHW"),
        precision=lax.Precision.HIGHEST,
    ) + bias.reshape(1, E, 1, 1)

    assert out.shape == ref.shape == (B, E, 4, 4)
    outf = out.astype(jnp.float32)
    assert jnp.allclose(outf, ref, atol=2e-2, rtol=2e-2), \
        float(jnp.max(jnp.abs(outf - ref)))

    print("KERNEL_OK")
</pallas_src>

<mosaic_0001>
module attributes {stable_mosaic.version = 11 : i64} {
  func.func @kernel(%arg0: i32, %arg1: i32, %arg2: memref<4x64x48xbf16, #tpu.memory_space<vmem>>, %arg3: memref<64x1xf32, #tpu.memory_space<vmem>>, %arg4: memref<1x48x128xbf16, #tpu.memory_space<vmem>>, %arg5: memref<1x48x128xbf16, #tpu.memory_space<vmem>>, %arg6: memref<1x64x128xbf16, #tpu.memory_space<vmem>>, %arg7: memref<48x256xbf16, #tpu.memory_space<vmem>>) attributes {dimension_semantics = [#tpu.dimension_semantics<parallel>, #tpu.dimension_semantics<parallel>], iteration_bounds = array<i64: 2, 1>, scalar_prefetch = 0 : i64, scratch_operands = 1 : i64, tpu.core_type = #tpu.core_type<tc>, window_params = [{pipeline_mode = #tpu.pipeline_mode<synchronous>, transform_indices = @transform_0, window_bounds = array<i64: 4, 64, 48>}, {pipeline_mode = #tpu.pipeline_mode<synchronous>, transform_indices = @transform_1, window_bounds = array<i64: 64, 1>}, {transform_indices = @transform_2, window_bounds = array<i64: 1, 48, 128>}, {transform_indices = @transform_3, window_bounds = array<i64: 1, 48, 128>}, {transform_indices = @transform_4, window_bounds = array<i64: 1, 64, 128>}]} {
    %c0 = arith.constant 0 : index
    %c0_0 = arith.constant 0 : index
    %c0_1 = arith.constant 0 : index
    %0 = vector.load %arg4[%c0, %c0_0, %c0_1] : memref<1x48x128xbf16, #tpu.memory_space<vmem>>, vector<1x48x128xbf16>
    %1 = vector.shape_cast %0 : vector<1x48x128xbf16> to vector<48x128xbf16>
    %c0_2 = arith.constant 0 : index
    %c0_3 = arith.constant 0 : index
    %2 = vector.load %arg7[%c0_2, %c0_3] : memref<48x256xbf16, #tpu.memory_space<vmem>>, vector<48x128xbf16>
    tpu.vector_store %arg7[%c0_2, %c0_3], %1 {strides = array<i32>} : memref<48x256xbf16, #tpu.memory_space<vmem>>, vector<48x128xbf16>,
    %c0_4 = arith.constant 0 : index
    %c0_5 = arith.constant 0 : index
    %c0_6 = arith.constant 0 : index
    %3 = vector.load %arg5[%c0_4, %c0_5, %c0_6] : memref<1x48x128xbf16, #tpu.memory_space<vmem>>, vector<1x48x128xbf16>
    %4 = vector.shape_cast %3 : vector<1x48x128xbf16> to vector<48x128xbf16>
    %c0_7 = arith.constant 0 : index
    %c128 = arith.constant 128 : index
    %5 = vector.load %arg7[%c0_7, %c128] : memref<48x256xbf16, #tpu.memory_space<vmem>>, vector<48x128xbf16>
    tpu.vector_store %arg7[%c0_7, %c128], %4 {strides = array<i32>} : memref<48x256xbf16, #tpu.memory_space<vmem>>, vector<48x128xbf16>,
    %cst = arith.constant 0.000000e+00 : f32
    %6 = vector.broadcast %cst : f32 to vector<64x128xf32>
    %c0_8 = arith.constant 0 : index
    %c0_9 = arith.constant 0 : index
    %c0_10 = arith.constant 0 : index
    %7 = vector.load %arg2[%c0_8, %c0_9, %c0_10] : memref<4x64x48xbf16, #tpu.memory_space<vmem>>, vector<1x64x48xbf16>
    %8 = vector.shape_cast %7 : vector<1x64x48xbf16> to vector<64x48xbf16>
    %c0_11 = arith.constant 0 : index
    %c0_12 = arith.constant 0 : index
    %9 = vector.load %arg7[%c0_11, %c0_12] : memref<48x256xbf16, #tpu.memory_space<vmem>>, vector<48x128xbf16>
    %cst_13 = arith.constant dense<0.000000e+00> : vector<64x128xf32>
    %10 = tpu.matmul %8, %9, %cst_13 {dimension_numbers = #tpu.dot_dimension_numbers<[1], [0], [0], [1], [0, 0, 1, 1], [], []>} : vector<64x48xbf16>, vector<48x128xbf16>, vector<64x128xf32> -> vector<64x128xf32>
    %11 = arith.addf %6, %10 : vector<64x128xf32>
    %c1 = arith.constant 1 : index
    %c0_14 = arith.constant 0 : index
    %c0_15 = arith.constant 0 : index
    %12 = vector.load %arg2[%c1, %c0_14, %c0_15] : memref<4x64x48xbf16, #tpu.memory_space<vmem>>, vector<1x64x48xbf16>
    %13 = vector.shape_cast %12 : vector<1x64x48xbf16> to vector<64x48xbf16>
    %c0_16 = arith.constant 0 : index
    %c1_17 = arith.constant 1 : index
    %14 = vector.load %arg7[%c0_16, %c1_17] : memref<48x256xbf16, #tpu.memory_space<vmem>>, vector<48x128xbf16>
    %cst_18 = arith.constant dense<0.000000e+00> : vector<64x128xf32>
    %15 = tpu.matmul %13, %14, %cst_18 {dimension_numbers = #tpu.dot_dimension_numbers<[1], [0], [0], [1], [0, 0, 1, 1], [], []>} : vector<64x48xbf16>, vector<48x128xbf16>, vector<64x128xf32> -> vector<64x128xf32>
    %16 = arith.addf %11, %15 : vector<64x128xf32>
    %c2 = arith.constant 2 : index
    %c0_19 = arith.constant 0 : index
    %c0_20 = arith.constant 0 : index
    %17 = vector.load %arg2[%c2, %c0_19, %c0_20] : memref<4x64x48xbf16, #tpu.memory_space<vmem>>, vector<1x64x48xbf16>
    %18 = vector.shape_cast %17 : vector<1x64x48xbf16> to vector<64x48xbf16>
    %c0_21 = arith.constant 0 : index
    %c5 = arith.constant 5 : index
    %19 = vector.load %arg7[%c0_21, %c5] : memref<48x256xbf16, #tpu.memory_space<vmem>>, vector<48x128xbf16>
    %cst_22 = arith.constant dense<0.000000e+00> : vector<64x128xf32>
    %20 = tpu.matmul %18, %19, %cst_22 {dimension_numbers = #tpu.dot_dimension_numbers<[1], [0], [0], [1], [0, 0, 1, 1], [], []>} : vector<64x48xbf16>, vector<48x128xbf16>, vector<64x128xf32> -> vector<64x128xf32>
    %21 = arith.addf %16, %20 : vector<64x128xf32>
    %c3 = arith.constant 3 : index
    %c0_23 = arith.constant 0 : index
    %c0_24 = arith.constant 0 : index
    %22 = vector.load %arg2[%c3, %c0_23, %c0_24] : memref<4x64x48xbf16, #tpu.memory_space<vmem>>, vector<1x64x48xbf16>
    %23 = vector.shape_cast %22 : vector<1x64x48xbf16> to vector<64x48xbf16>
    %c0_25 = arith.constant 0 : index
    %c6 = arith.constant 6 : index
    %24 = vector.load %arg7[%c0_25, %c6] : memref<48x256xbf16, #tpu.memory_space<vmem>>, vector<48x128xbf16>
    %cst_26 = arith.constant dense<0.000000e+00> : vector<64x128xf32>
    %25 = tpu.matmul %23, %24, %cst_26 {dimension_numbers = #tpu.dot_dimension_numbers<[1], [0], [0], [1], [0, 0, 1, 1], [], []>} : vector<64x48xbf16>, vector<48x128xbf16>, vector<64x128xf32> -> vector<64x128xf32>
    %26 = arith.addf %21, %25 : vector<64x128xf32>
    %c0_27 = arith.constant 0 : index
    %c0_28 = arith.constant 0 : index
    %27 = vector.load %arg3[%c0_27, %c0_28] : memref<64x1xf32, #tpu.memory_space<vmem>>, vector<64x1xf32>
    %28 = vector.broadcast %27 : vector<64x1xf32> to vector<64x128xf32>
    %29 = arith.addf %26, %28 : vector<64x128xf32>
    %30 = arith.truncf %29 : vector<64x128xf32> to vector<64x128xbf16>
    %c0_29 = arith.constant 0 : index
    %c0_30 = arith.constant 0 : index
    %c0_31 = arith.constant 0 : index
    %31 = vector.load %arg6[%c0_29, %c0_30, %c0_31] : memref<1x64x128xbf16, #tpu.memory_space<vmem>>, vector<1x64x128xbf16>
    %32 = vector.shape_cast %31 : vector<1x64x128xbf16> to vector<64x128xbf16>
    %33 = vector.shape_cast %30 : vector<64x128xbf16> to vector<1x64x128xbf16>
    tpu.vector_store %arg6[%c0_29, %c0_30, %c0_31], %33 {strides = array<i32>} : memref<1x64x128xbf16, #tpu.memory_space<vmem>>, vector<1x64x128xbf16>,
    return
  }
  func.func @transform_0(%arg0: i32, %arg1: i32) -> (i32, i32, i32) {
    %c0_i32 = arith.constant 0 : i32
    %c0_i32_0 = arith.constant 0 : i32
    %c0_i32_1 = arith.constant 0 : i32
    %c0_i32_2 = arith.constant 0 : i32
    return %c0_i32, %c0_i32_0, %c0_i32_1 : i32, i32, i32
  }
  func.func @transform_1(%arg0: i32, %arg1: i32) -> (i32, i32) {
    %c0_i32 = arith.constant 0 : i32
    %c0_i32_0 = arith.constant 0 : i32
    %c0_i32_1 = arith.constant 0 : i32
    return %c0_i32, %c0_i32_0 : i32, i32
  }
  func.func @transform_2(%arg0: i32, %arg1: i32) -> (i32, i32, i32) {
    %c0_i32 = arith.constant 0 : i32
    %c0_i32_0 = arith.constant 0 : i32
    return %arg0, %c0_i32, %arg1 : i32, i32, i32
  }
  func.func @transform_3(%arg0: i32, %arg1: i32) -> (i32, i32, i32) {
    %c1_i32 = arith.constant 1 : i32
    %0 = arith.addi %arg1, %c1_i32 : i32
    %c1_i32_0 = arith.constant 1 : i32
    %1 = arith.muli %0, %c1_i32_0 : i32
    %c0_i32 = arith.constant 0 : i32
    %c0_i32_1 = arith.constant 0 : i32
    return %arg0, %c0_i32, %1 : i32, i32, i32
  }
  func.func @transform_4(%arg0: i32, %arg1: i32) -> (i32, i32, i32) {
    %c0_i32 = arith.constant 0 : i32
    %c0_i32_0 = arith.constant 0 : i32
    return %arg0, %c0_i32, %arg1 : i32, i32, i32
  }
}

</mosaic_0001>

<llo_original>
// kernel: _lambda_.1
$region0: #{_lambda_.1}
  #allocation0 [shape = 'u32[]', space=smem, size = 0x4, offset = 0x4, fixed_abs, tag = 'smem constant byte address 0x4 - core index']
  #allocation1 [shape = 'u32[72,128]{1,0:T(1,128)}', space=vmem, size = 0x9000, scoped, tag = 'internal scratch']
  #allocation2 [shape = 'bf16[48,256]{1,0:T(8,128)(2,1)}', space=vmem, size = 0x6000, scoped, tag = 'scratch operand']
  %s0 = inlined_call_operand.vmem [shape: bf16[4,64,48], index: 0, kind: input, shape index: {}]
  %s1 = inlined_call_operand.vmem [shape: f32[64,1], index: 1, kind: input, shape index: {}]
  %s2 = inlined_call_operand.vmem [shape: bf16[2,48,256], index: 2, kind: input, shape index: {}, may-alias: {2,3}]
  %s3 = inlined_call_operand.vmem [shape: bf16[2,48,256], index: 3, kind: input, shape index: {}, may-alias: {2,3}]
  %s4 = inlined_call_operand.vmem [shape: bf16[2,64,128], index: 4, kind: output, shape index: {}]
  %s5 = sld [smem:[#allocation0]]
  $region131: #{_lambda_.1} parent=0
    _
  %s7 = ssub.s32 1, %s5
  %s8 = scalar_select 0, %s7, %s5
  $region1: #{_lambda_.1} parent=0
    #allocation3 [shape = 'u8[24576]{0}', space=vmem, size = 0x6000, scoped, tag = 'input window, operand 2']
    #allocation4 [shape = 'u8[24576]{0}', space=vmem, size = 0x6000, scoped, tag = 'input window, operand 3']
    loop: start=0, step=1, limit=4
    $region2: #{_lambda_.1} parent=1 // loop_pre_header
      _
    $region3: #{_lambda_.1} parent=1 // loop_header
      %s10 = sphi 0, %s14
      %p11 = scmp.ge.s32.totalorder %s10, 4
      %s17 = sphi 0, %s29
      %s18 = sphi 0, %s25
      %s19 = sphi 0, %s17
      %s20 = sphi 0, %s18
      %s21 = sphi 0, %s19
      %s22 = sphi 0, %s20
      %s30 = sphi 0, %s30
      %s32 = sphi 0, %s30
      %s33 = sphi 0, %s32
      %s47 = sphi 0, %s33
      %s51 = sphi 0, %s51
      %s53 = sphi 0, %s51
      %s54 = sphi 0, %s53
      %s68 = sphi 0, %s54
      %s76 = sphi 0, %s78
      %s79 = sphi 0, %s76
      %s80 = sphi 0, %s79
      %s96 = sphi 0, %s80
      %s106 = sphi 0, %s108
      %s109 = sphi 0, %s106
      %s110 = sphi 0, %s109
      %s126 = sphi 0, %s110
      %s134 = sphi 0, %s136
      %s137 = sphi 0, %s134
      %s138 = sphi 0, %s137
      %s154 = sphi 0, %s138
    $region4: #{_lambda_.1} parent=1 // loop_header_branch
      %13 = sbr.rel (%p11) target = $region8
    $region5: #{_lambda_.1} parent=1 // loop_body
      %s15 = ssub.s32 %s10, 1
      %s16 = ssub.s32 %s10, 2
      %s23 = sadd.s32 1, %s18
      %p24 = scmp.ge.s32.totalorder %s23, 1
      %s25 = scalar_select %p24, 0, %s23
      %s26 = sadd.s32 1, %s17
      %s27 = scalar_select %p24, %s26, %s17
      %p28 = scmp.ge.s32.totalorder %s27, 2
      %s29 = scalar_select %p28, 0, %s27
      %s31 = sadd.s32 %s30, 1
      %p34 = scmp.eq.s32.totalorder %s10, 1
      %p35 = scmp.ne.s32.totalorder %s30, %s32
      %p36 = scmp.eq.s32.totalorder %s10, 0
      %p37 = por %p35, %p36
      %p38 = scmp.ne.s32.totalorder %s30, %s32
      %p39 = scmp.eq.s32.totalorder %s15, 1
      %p40 = por %p38, %p39
      %p41 = scmp.ne.s32.totalorder %s32, %s33
      %p42 = scmp.eq.s32.totalorder %s15, 0
      %p43 = por %p41, %p42
      %p44 = scmp.ne.s32.totalorder %s32, %s33
      %p45 = scmp.eq.s32.totalorder %s16, 1
      %p46 = por %p44, %p45
      %p48 = scmp.ne.s32.totalorder %s33, %s47
      %p49 = scmp.eq.s32.totalorder %s16, 0
      %p50 = por %p48, %p49
      %s52 = sadd.s32 %s51, 1
      %p55 = scmp.eq.s32.totalorder %s10, 1
      %p56 = scmp.ne.s32.totalorder %s51, %s53
      %p57 = scmp.eq.s32.totalorder %s10, 0
      %p58 = por %p56, %p57
      %p59 = scmp.ne.s32.totalorder %s51, %s53
      %p60 = scmp.eq.s32.totalorder %s15, 1
      %p61 = por %p59, %p60
      %p62 = scmp.ne.s32.totalorder %s53, %s54
      %p63 = scmp.eq.s32.totalorder %s15, 0
      %p64 = por %p62, %p63
      %p65 = scmp.ne.s32.totalorder %s53, %s54
      %p66 = scmp.eq.s32.totalorder %s16, 1
      %p67 = por %p65, %p66
      %p69 = scmp.ne.s32.totalorder %s54, %s68
      %p70 = scmp.eq.s32.totalorder %s16, 0
      %p71 = por %p69, %p70
      %s72 = ssub.s32 %s17, %s29
      %s73 = ssub.s32 %s18, %s25
      %s74 = sor.u32 %s72, %s73
      %p75 = scmp.eq.s32.totalorder %s74, 0
      %s77 = sadd.s32 %s76, 1
      %s78 = scalar_select %p75, %s76, %s77
      %p81 = pneg %p75
      %p82 = scmp.eq.s32.totalorder %s10, 1
      %p83 = por %p81, %p82
      %p84 = scmp.ne.s32.totalorder %s76, %s79
      %p85 = scmp.eq.s32.totalorder %s10, 0
      %p86 = por %p84, %p85
      %p87 = scmp.ne.s32.totalorder %s76, %s79
      %p88 = scmp.eq.s32.totalorder %s15, 1
      %p89 = por %p87, %p88
      %p90 = scmp.ne.s32.totalorder %s79, %s80
      %p91 = scmp.eq.s32.totalorder %s15, 0
      %p92 = por %p90, %p91
      %p93 = scmp.ne.s32.totalorder %s79, %s80
      %p94 = scmp.eq.s32.totalorder %s16, 1
      %p95 = por %p93, %p94
      %p97 = scmp.ne.s32.totalorder %s80, %s96
      %p98 = scmp.eq.s32.totalorder %s16, 0
      %p99 = por %p97, %p98
      %s100 = sadd.s32 %s18, 1
      %s101 = sadd.s32 %s25, 1
      %s102 = ssub.s32 %s17, %s29
      %s103 = ssub.s32 %s100, %s101
      %s104 = sor.u32 %s102, %s103
      %p105 = scmp.eq.s32.totalorder %s104, 0
      %s107 = sadd.s32 %s106, 1
      %s108 = scalar_select %p105, %s106, %s107
      %p111 = pneg %p105
      %p112 = scmp.eq.s32.totalorder %s10, 1
      %p113 = por %p111, %p112
      %p114 = scmp.ne.s32.totalorder %s106, %s109
      %p115 = scmp.eq.s32.totalorder %s10, 0
      %p116 = por %p114, %p115
      %p117 = scmp.ne.s32.totalorder %s106, %s109
      %p118 = scmp.eq.s32.totalorder %s15, 1
      %p119 = por %p117, %p118
      %p120 = scmp.ne.s32.totalorder %s109, %s110
      %p121 = scmp.eq.s32.totalorder %s15, 0
      %p122 = por %p120, %p121
      %p123 = scmp.ne.s32.totalorder %s109, %s110
      %p124 = scmp.eq.s32.totalorder %s16, 1
      %p125 = por %p123, %p124
      %p127 = scmp.ne.s32.totalorder %s110, %s126
      %p128 = scmp.eq.s32.totalorder %s16, 0
      %p129 = por %p127, %p128
      %s130 = ssub.s32 %s17, %s29
      %s131 = ssub.s32 %s18, %s25
      %s132 = sor.u32 %s130, %s131
      %p133 = scmp.eq.s32.totalorder %s132, 0
      %s135 = sadd.s32 %s134, 1
      %s136 = scalar_select %p133, %s134, %s135
      %p139 = pneg %p133
      %p140 = scmp.eq.s32.totalorder %s10, 1
      %p141 = por %p139, %p140
      %p142 = scmp.ne.s32.totalorder %s134, %s137
      %p143 = scmp.eq.s32.totalorder %s10, 0
      %p144 = por %p142, %p143
      %p145 = scmp.ne.s32.totalorder %s134, %s137
      %p146 = scmp.eq.s32.totalorder %s15, 1
      %p147 = por %p145, %p146
      %p148 = scmp.ne.s32.totalorder %s137, %s138
      %p149 = scmp.eq.s32.totalorder %s15, 0
      %p150 = por %p148, %p149
      %p151 = scmp.ne.s32.totalorder %s137, %s138
      %p152 = scmp.eq.s32.totalorder %s16, 1
      %p153 = por %p151, %p152
      %p155 = scmp.ne.s32.totalorder %s138, %s154
      %p156 = scmp.eq.s32.totalorder %s16, 0
      %p157 = por %p155, %p156
      %p158 = scmp.le.s32.totalorder 1, %s10
      %p159 = scmp.lt.s32.totalorder %s10, 3
      %p160 = pnand %p158, %p159
      %p161 = pneg %p160
      // Predicated region
      $region9: #{_lambda_.1} parent=5 // pred_check
        _
      $region10: #{_lambda_.1} parent=5 // pred_check_branch
        %163 = sbr.rel (%p160) target = $region12
      $region11: #{_lambda_.1} parent=5 // pred_region
        %s164 = ssub.s32 %s10, 1
        // Predicated region
        $region13: #{_lambda_.1} parent=11 // pred_check
          %p165 = pneg %p43
        $region14: #{_lambda_.1} parent=11 // pred_check_branch
          %167 = sbr.rel (%p165) target = $region16
        $region15: #{_lambda_.1} parent=11 // pred_region
          _
        $region16: #{_lambda_.1} parent=11 // pred_fallthru
          _
        // Predicated region
        $region17: #{_lambda_.1} parent=11 // pred_check
          %p168 = pneg %p64
        $region18: #{_lambda_.1} parent=11 // pred_check_branch
          %170 = sbr.rel (%p168) target = $region20
        $region19: #{_lambda_.1} parent=11 // pred_region
          _
        $region20: #{_lambda_.1} parent=11 // pred_fallthru
          _
      $region12: #{_lambda_.1} parent=5 // pred_fallthru
        _
      %p171 = scmp.lt.s32.totalorder %s10, 2
      // Predicated region
      $region21: #{_lambda_.1} parent=5 // pred_check
        %p172 = pneg %p171
      $region22: #{_lambda_.1} parent=5 // pred_check_branch
        %174 = sbr.rel (%p172) target = $region24
      $region23: #{_lambda_.1} parent=5 // pred_region
        // Predicated region
        $region25: #{_lambda_.1} parent=23 // pred_check
          %p175 = pneg %p86
        $region26: #{_lambda_.1} parent=23 // pred_check_branch
          %177 = sbr.rel (%p175) target = $region28
        $region27: #{_lambda_.1} parent=23 // pred_region
          %s178 = sand.u32 %s76, 1
          %s179 = sand.u32 %s76, 1
          %s180 = smul.addr %s179, 24
          %s181 = scalar_lea.vmem [#allocation3], %s180
          %s182 = smul.addr %s17, 12
          %s183 = sadd.s32 %s18, %s182
          %s184 = smul.addr %s183, 4
          %s185 = scalar_lea.vmem %s2, %s184
          // Predicated region
          $region29: #{_lambda_.1} parent=27 // pred_check
            _
          $region30: #{_lambda_.1} parent=27 // pred_check_branch
            %187 = sbr.rel (0) target = $region32
          $region31: #{_lambda_.1} parent=27 // pred_region
            // Predicated region
            $region33: #{_lambda_.1} parent=31 // pred_check
              _
            $region34: #{_lambda_.1} parent=31 // pred_check_branch
              %189 = sbr.rel target = $region36
            $region35: #{_lambda_.1} parent=31 // pred_region
              // Predicated region
              $region48: #{_lambda_.1} parent=35 // pred_check
                _
              $region49: #{_lambda_.1} parent=35 // pred_check_branch
                %215 = sbr.rel (0) target = $region51
              $region50: #{_lambda_.1} parent=35 // pred_region
                loop: start=0, step=1, limit=1
                $region52: #{_lambda_.1} parent=50 // loop_pre_header
                  _
                $region53: #{_lambda_.1} parent=50 // loop_header
                  %s217 = sphi 0, %s221
                  %p218 = scmp.ge.s32.totalorder %s217, 1
                  %s222 = sphi %s185, %s185
                  %s223 = sphi %s181, %s181
                $region54: #{_lambda_.1} parent=50 // loop_header_branch
                  %220 = sbr.rel (%p218) target = $region58
                $region55: #{_lambda_.1} parent=50 // loop_body
                  _
                $region56: #{_lambda_.1} parent=50 // loop_footer
                  %s221 = sadd.s32 1, %s217
                $region57: #{_lambda_.1} parent=50 // loop_footer_branch
                  %216 = sbr.rel target = $region53
                $region58: #{_lambda_.1} parent=50 // loop_exit
                  _
                %s225 = ssub.s32 16, 1
                loop: start=0, step=1, limit=1
                $region59: #{_lambda_.1} parent=50 // loop_pre_header
                  _
                $region60: #{_lambda_.1} parent=50 // loop_header
                  %s227 = sphi 0, %s231
                  %p228 = scmp.ge.s32.totalorder %s227, 1
                  %s232 = sphi %s185, %s185
                  %s233 = sphi %s181, %s181
                $region61: #{_lambda_.1} parent=50 // loop_header_branch
                  %230 = sbr.rel (%p228) target = $region65
                $region62: #{_lambda_.1} parent=50 // loop_body
                  %v234 = vld [vmem:[%s232] sm:%s225]
                  %235 = vst [vmem:[%s233] sm:%s225] %v234
                  %v236 = vld [vmem:[%s232 + $0x8] sm:%s225]
                  %237 = vst [vmem:[%s233 + $0x4] sm:%s225] %v236
                  %v238 = vld [vmem:[%s232 + $0x10] sm:%s225]
                  %239 = vst [vmem:[%s233 + $0x8] sm:%s225] %v238
                  %v240 = vld [vmem:[%s232 + $0x18] sm:%s225]
                  %241 = vst [vmem:[%s233 + $0xc] sm:%s225] %v240
                  %v242 = vld [vmem:[%s232 + $0x20] sm:%s225]
                  %243 = vst [vmem:[%s233 + $0x10] sm:%s225] %v242
                  %v244 = vld [vmem:[%s232 + $0x28] sm:%s225]
                  %245 = vst [vmem:[%s233 + $0x14] sm:%s225] %v244
                $region63: #{_lambda_.1} parent=50 // loop_footer
                  %s231 = sadd.s32 1, %s227
                $region64: #{_lambda_.1} parent=50 // loop_footer_branch
                  %226 = sbr.rel target = $region60
                $region65: #{_lambda_.1} parent=50 // loop_exit
                  _
              $region51: #{_lambda_.1} parent=35 // pred_fallthru
                _
            $region36: #{_lambda_.1} parent=31 // pred_fallthru
              _
            // Predicated region
            $region37: #{_lambda_.1} parent=31 // pred_check
              _
            $region38: #{_lambda_.1} parent=31 // pred_check_branch
              %191 = sbr.rel (0) target = $region40
            $region39: #{_lambda_.1} parent=31 // pred_region
              %s193 = ssub.s32 16, 1
              loop: start=0, step=1, limit=1
              $region41: #{_lambda_.1} parent=39 // loop_pre_header
                _
              $region42: #{_lambda_.1} parent=39 // loop_header
                %s195 = sphi 0, %s199
                %p196 = scmp.ge.s32.totalorder %s195, 1
                %s200 = sphi %s185, %s185
                %s201 = sphi %s181, %s181
              $region43: #{_lambda_.1} parent=39 // loop_header_branch
                %198 = sbr.rel (%p196) target = $region47
              $region44: #{_lambda_.1} parent=39 // loop_body
                %v202 = vld [vmem:[%s200] sm:%s193]
                %203 = vst [vmem:[%s201] sm:%s193] %v202
                %v204 = vld [vmem:[%s200 + $0x8] sm:%s193]
                %205 = vst [vmem:[%s201 + $0x4] sm:%s193] %v204
                %v206 = vld [vmem:[%s200 + $0x10] sm:%s193]
                %207 = vst [vmem:[%s201 + $0x8] sm:%s193] %v206
                %v208 = vld [vmem:[%s200 + $0x18] sm:%s193]
                %209 = vst [vmem:[%s201 + $0xc] sm:%s193] %v208
                %v210 = vld [vmem:[%s200 + $0x20] sm:%s193]
                %211 = vst [vmem:[%s201 + $0x10] sm:%s193] %v210
                %v212 = vld [vmem:[%s200 + $0x28] sm:%s193]
                %213 = vst [vmem:[%s201 + $0x14] sm:%s193] %v212
              $region45: #{_lambda_.1} parent=39 // loop_footer
                %s199 = sadd.s32 1, %s195
              $region46: #{_lambda_.1} parent=39 // loop_footer_branch
                %194 = sbr.rel target = $region42
              $region47: #{_lambda_.1} parent=39 // loop_exit
                _
            $region40: #{_lambda_.1} parent=31 // pred_fallthru
              _
          $region32: #{_lambda_.1} parent=27 // pred_fallthru
            _
          %246 = vnop
        $region28: #{_lambda_.1} parent=23 // pred_fallthru
          _
        // Predicated region
        $region66: #{_lambda_.1} parent=23 // pred_check
          %p247 = pneg %p116
        $region67: #{_lambda_.1} parent=23 // pred_check_branch
          %249 = sbr.rel (%p247) target = $region69
        $region68: #{_lambda_.1} parent=23 // pred_region
          %s250 = sand.u32 %s106, 1
          %s251 = sand.u32 %s106, 1
          %s252 = smul.addr %s251, 24
          %s253 = scalar_lea.vmem [#allocation4], %s252
          %s254 = sadd.s32 %s18, 1
          %s255 = smul.addr %s17, 12
          %s256 = sadd.s32 %s254, %s255
          %s257 = smul.addr %s256, 4
          %s258 = scalar_lea.vmem %s3, %s257
          // Predicated region
          $region70: #{_lambda_.1} parent=68 // pred_check
            _
          $region71: #{_lambda_.1} parent=68 // pred_check_branch
            %260 = sbr.rel (0) target = $region73
          $region72: #{_lambda_.1} parent=68 // pred_region
            // Predicated region
            $region74: #{_lambda_.1} parent=72 // pred_check
              _
            $region75: #{_lambda_.1} parent=72 // pred_check_branch
              %262 = sbr.rel target = $region77
            $region76: #{_lambda_.1} parent=72 // pred_region
              // Predicated region
              $region89: #{_lambda_.1} parent=76 // pred_check
                _
              $region90: #{_lambda_.1} parent=76 // pred_check_branch
                %288 = sbr.rel (0) target = $region92
              $region91: #{_lambda_.1} parent=76 // pred_region
                loop: start=0, step=1, limit=1
                $region93: #{_lambda_.1} parent=91 // loop_pre_header
                  _
                $region94: #{_lambda_.1} parent=91 // loop_header
                  %s290 = sphi 0, %s294
                  %p291 = scmp.ge.s32.totalorder %s290, 1
                  %s295 = sphi %s258, %s258
                  %s296 = sphi %s253, %s253
                $region95: #{_lambda_.1} parent=91 // loop_header_branch
                  %293 = sbr.rel (%p291) target = $region99
                $region96: #{_lambda_.1} parent=91 // loop_body
                  _
                $region97: #{_lambda_.1} parent=91 // loop_footer
                  %s294 = sadd.s32 1, %s290
                $region98: #{_lambda_.1} parent=91 // loop_footer_branch
                  %289 = sbr.rel target = $region94
                $region99: #{_lambda_.1} parent=91 // loop_exit
                  _
                %s298 = ssub.s32 16, 1
                loop: start=0, step=1, limit=1
                $region100: #{_lambda_.1} parent=91 // loop_pre_header
                  _
                $region101: #{_lambda_.1} parent=91 // loop_header
                  %s300 = sphi 0, %s304
                  %p301 = scmp.ge.s32.totalorder %s300, 1
                  %s305 = sphi %s258, %s258
                  %s306 = sphi %s253, %s253
                $region102: #{_lambda_.1} parent=91 // loop_header_branch
                  %303 = sbr.rel (%p301) target = $region106
                $region103: #{_lambda_.1} parent=91 // loop_body
                  %v307 = vld [vmem:[%s305] sm:%s298]
                  %308 = vst [vmem:[%s306] sm:%s298] %v307
                  %v309 = vld [vmem:[%s305 + $0x8] sm:%s298]
                  %310 = vst [vmem:[%s306 + $0x4] sm:%s298] %v309
                  %v311 = vld [vmem:[%s305 + $0x10] sm:%s298]
                  %312 = vst [vmem:[%s306 + $0x8] sm:%s298] %v311
                  %v313 = vld [vmem:[%s305 + $0x18] sm:%s298]
                  %314 = vst [vmem:[%s306 + $0xc] sm:%s298] %v313
                  %v315 = vld [vmem:[%s305 + $0x20] sm:%s298]
                  %316 = vst [vmem:[%s306 + $0x10] sm:%s298] %v315
                  %v317 = vld [vmem:[%s305 + $0x28] sm:%s298]
                  %318 = vst [vmem:[%s306 + $0x14] sm:%s298] %v317
                $region104: #{_lambda_.1} parent=91 // loop_footer
                  %s304 = sadd.s32 1, %s300
                $region105: #{_lambda_.1} parent=91 // loop_footer_branch
                  %299 = sbr.rel target = $region101
                $region106: #{_lambda_.1} parent=91 // loop_exit
                  _
              $region92: #{_lambda_.1} parent=76 // pred_fallthru
                _
            $region77: #{_lambda_.1} parent=72 // pred_fallthru
              _
            // Predicated region
            $region78: #{_lambda_.1} parent=72 // pred_check
              _
            $region79: #{_lambda_.1} parent=72 // pred_check_branch
              %264 = sbr.rel (0) target = $region81
            $region80: #{_lambda_.1} parent=72 // pred_region
              %s266 = ssub.s32 16, 1
              loop: start=0, step=1, limit=1
              $region82: #{_lambda_.1} parent=80 // loop_pre_header
                _
              $region83: #{_lambda_.1} parent=80 // loop_header
                %s268 = sphi 0, %s272
                %p269 = scmp.ge.s32.totalorder %s268, 1
                %s273 = sphi %s258, %s258
                %s274 = sphi %s253, %s253
              $region84: #{_lambda_.1} parent=80 // loop_header_branch
                %271 = sbr.rel (%p269) target = $region88
              $region85: #{_lambda_.1} parent=80 // loop_body
                %v275 = vld [vmem:[%s273] sm:%s266]
                %276 = vst [vmem:[%s274] sm:%s266] %v275
                %v277 = vld [vmem:[%s273 + $0x8] sm:%s266]
                %278 = vst [vmem:[%s274 + $0x4] sm:%s266] %v277
                %v279 = vld [vmem:[%s273 + $0x10] sm:%s266]
                %280 = vst [vmem:[%s274 + $0x8] sm:%s266] %v279
                %v281 = vld [vmem:[%s273 + $0x18] sm:%s266]
                %282 = vst [vmem:[%s274 + $0xc] sm:%s266] %v281
                %v283 = vld [vmem:[%s273 + $0x20] sm:%s266]
                %284 = vst [vmem:[%s274 + $0x10] sm:%s266] %v283
                %v285 = vld [vmem:[%s273 + $0x28] sm:%s266]
                %286 = vst [vmem:[%s274 + $0x14] sm:%s266] %v285
              $region86: #{_lambda_.1} parent=80 // loop_footer
                %s272 = sadd.s32 1, %s268
              $region87: #{_lambda_.1} parent=80 // loop_footer_branch
                %267 = sbr.rel target = $region83
              $region88: #{_lambda_.1} parent=80 // loop_exit
                _
            $region81: #{_lambda_.1} parent=72 // pred_fallthru
              _
          $region73: #{_lambda_.1} parent=68 // pred_fallthru
            _
          %319 = vnop
        $region69: #{_lambda_.1} parent=23 // pred_fallthru
          _
      $region24: #{_lambda_.1} parent=5 // pred_fallthru
        _
      %p320 = scmp.le.s32.totalorder 1, %s10
      %p321 = scmp.lt.s32.totalorder %s10, 3
      %p322 = pnand %p320, %p321
      %p323 = pneg %p322
      // Predicated region
      $region107: #{_lambda_.1} parent=5 // pred_check
        _
      $region108: #{_lambda_.1} parent=5 // pred_check_branch
        %325 = sbr.rel (%p322) target = $region110
      $region109: #{_lambda_.1} parent=5 // pred_region
        %s326 = ssub.s32 %s10, 1
        %s327 = sand.u32 %s79, 1
        %s328 = sand.u32 %s79, 1
        %s329 = smul.addr %s328, 24
        %s330 = scalar_lea.vmem [#allocation3], %s329
        // Predicated region
        $region111: #{_lambda_.1} parent=109 // pred_check
          %p331 = pneg %p92
        $region112: #{_lambda_.1} parent=109 // pred_check_branch
          %333 = sbr.rel (%p331) target = $region114
        $region113: #{_lambda_.1} parent=109 // pred_region
          _
        $region114: #{_lambda_.1} parent=109 // pred_fallthru
          _
        %s334 = sand.u32 %s109, 1
        %s335 = sand.u32 %s109, 1
        %s336 = smul.addr %s335, 24
        %s337 = scalar_lea.vmem [#allocation4], %s336
        // Predicated region
        $region115: #{_lambda_.1} parent=109 // pred_check
          %p338 = pneg %p122
        $region116: #{_lambda_.1} parent=109 // pred_check_branch
          %340 = sbr.rel (%p338) target = $region118
        $region117: #{_lambda_.1} parent=109 // pred_region
          _
        $region118: #{_lambda_.1} parent=109 // pred_fallthru
          _
        %p341 = pneg %p43
        %p342 = pneg %p40
        %p343 = pneg %p64
        %p344 = pneg %p61
        %s345 = sand.u32 %s79, 1
        %s346 = sand.u32 %s79, 1
        %s347 = smul.addr %s346, 24
        %s348 = scalar_lea.vmem [#allocation3], %s347
        %p349 = pneg %p92
        %p350 = pneg %p89
        %s351 = sand.u32 %s109, 1
        %s352 = sand.u32 %s109, 1
        %s353 = smul.addr %s352, 24
        %s354 = scalar_lea.vmem [#allocation4], %s353
        %p355 = pneg %p122
        %p356 = pneg %p119
        %p357 = pneg %p150
        %p358 = pneg %p147
        %p359 = scmp.lt.s32.totalorder %s19, 1
        %s360 = scalar_select %p359, %s19, 1
        %p361 = scmp.lt.s32.totalorder %s20, 0
        %s362 = scalar_select %p361, %s20, 0
        %s363 = smul.addr %s360, 8
        %s364 = sadd.s32 %s362, %s363
        %s365 = smul.addr %s364, 4
        %s366 = scalar_lea.vmem %s4, %s365
        %s367 = sadd.s32 %s20, 1
        %p368 = scmp.lt.s32.totalorder %s19, 1
        %s369 = scalar_select %p368, %s19, 1
        %p370 = scmp.lt.s32.totalorder %s20, 0
        %s371 = scalar_select %p370, %s20, 0
        %s372 = smul.addr %s369, 8
        %s373 = sadd.s32 %s371, %s372
        %s374 = smul.addr %s373, 4
        %s375 = scalar_lea.vmem %s4, %s374
        %v377 = vld [vmem:[%s330] sm:$0xf]
        %v378 = vld [vmem:[%s330 + $0x4] sm:$0xf]
        %v379 = vld [vmem:[%s330 + $0x8] sm:$0xf]
        %v380 = vld [vmem:[%s330 + $0xc] sm:$0xf]
        %v381 = vld [vmem:[%s330 + $0x10] sm:$0xf]
        %v382 = vld [vmem:[%s330 + $0x14] sm:$0xf]
        %383 = vst [vmem:[#allocation2] sm:$0xf] %v377
        %384 = vst [vmem:[#allocation2 + $0x8] sm:$0xf] %v378
        %385 = vst [vmem:[#allocation2 + $0x10] sm:$0xf] %v379
        %386 = vst [vmem:[#allocation2 + $0x18] sm:$0xf] %v380
        %387 = vst [vmem:[#allocation2 + $0x20] sm:$0xf] %v381
        %388 = vst [vmem:[#allocation2 + $0x28] sm:$0xf] %v382
        %v389 = vld [vmem:[%s337] sm:$0xf]
        %v390 = vld [vmem:[%s337 + $0x4] sm:$0xf]
        %v391 = vld [vmem:[%s337 + $0x8] sm:$0xf]
        %v392 = vld [vmem:[%s337 + $0xc] sm:$0xf]
        %v393 = vld [vmem:[%s337 + $0x10] sm:$0xf]
        %v394 = vld [vmem:[%s337 + $0x14] sm:$0xf]
        %395 = vst [vmem:[#allocation2 + $0x4] sm:$0xf] %v389
        %396 = vst [vmem:[#allocation2 + $0xc] sm:$0xf] %v390
        %397 = vst [vmem:[#allocation2 + $0x14] sm:$0xf] %v391
        %398 = vst [vmem:[#allocation2 + $0x1c] sm:$0xf] %v392
        %399 = vst [vmem:[#allocation2 + $0x24] sm:$0xf] %v393
        %400 = vst [vmem:[#allocation2 + $0x2c] sm:$0xf] %v394
        %v401 = vld [vmem:[%s0] sm:$0xf]
        %v402 = vld [vmem:[%s0 + $0x4] sm:$0xf]
        %v403 = vld [vmem:[%s0 + $0x8] sm:$0xf]
        %v404 = vld [vmem:[%s0 + $0xc] sm:$0xf]
        %v405 = vld [vmem:[%s0 + $0x10] sm:$0xf]
        %v406 = vld [vmem:[%s0 + $0x14] sm:$0xf]
        %v407 = vld [vmem:[%s0 + $0x18] sm:$0xf]
        %v408 = vld [vmem:[%s0 + $0x1c] sm:$0xf]
        %v409 = vld [vmem:[#allocation2] sm:$0xf]
        %v410 = vld [vmem:[#allocation2 + $0x8] sm:$0xf]
        %v411 = vld [vmem:[#allocation2 + $0x10] sm:$0xf]
        %v412 = vld [vmem:[#allocation2 + $0x18] sm:$0xf]
        %v413 = vld [vmem:[#allocation2 + $0x20] sm:$0xf]
        %v414 = vld [vmem:[#allocation2 + $0x28] sm:$0xf]
        %s415 = scalar_lea.vmem %s0, 32
        %v416 = vld [vmem:[%s415] sm:$0xf]
        %v417 = vld [vmem:[%s415 + $0x4] sm:$0xf]
        %v418 = vld [vmem:[%s415 + $0x8] sm:$0xf]
        %v419 = vld [vmem:[%s415 + $0xc] sm:$0xf]
        %v420 = vld [vmem:[%s415 + $0x10] sm:$0xf]
        %v421 = vld [vmem:[%s415 + $0x14] sm:$0xf]
        %v422 = vld [vmem:[%s415 + $0x18] sm:$0xf]
        %v423 = vld [vmem:[%s415 + $0x1c] sm:$0xf]
        %v424 = vld [vmem:[#allocation2] sm:$0xff]
        %v425 = vld [vmem:[#allocation2 + $0x8] sm:$0xff]
        %v426 = vld [vmem:[#allocation2 + $0x10] sm:$0xff]
        %v427 = vld [vmem:[#allocation2 + $0x18] sm:$0xff]
        %v428 = vld [vmem:[#allocation2 + $0x20] sm:$0xff]
        %v429 = vld [vmem:[#allocation2 + $0x28] sm:$0xff]
        %v438 = vunpack.c.l.b16 %v416
        %v439 = vunpack.c.l.b16 %v417
        %v440 = vunpack.c.l.b16 %v418
        %v441 = vunpack.c.l.b16 %v419
        %v442 = vunpack.c.l.b16 %v420
        %v443 = vunpack.c.l.b16 %v421
        %v444 = vunpack.c.l.b16 %v422
        %v445 = vunpack.c.l.b16 %v423
        %v446 = vpack.c.b16 %v439, %v438
        %v447 = vpack.c.b16 %v441, %v440
        %v448 = vpack.c.b16 %v443, %v442
        %v449 = vpack.c.b16 %v445, %v444
        %v456 = vunpack.c.l.b16 %v424
        %v457 = vunpack.c.h.b16 %v424
        %v458 = vunpack.c.l.b16 %v425
        %v459 = vunpack.c.h.b16 %v425
        %v460 = vunpack.c.l.b16 %v426
        %v461 = vunpack.c.h.b16 %v426
        %v462 = vunpack.c.l.b16 %v427
        %v463 = vunpack.c.h.b16 %v427
        %v464 = vunpack.c.l.b16 %v428
        %v465 = vunpack.c.h.b16 %v428
        %v466 = vunpack.c.l.b16 %v429
        %v467 = vunpack.c.h.b16 %v429
        %v468 = vpack.c.b16 %v458, %v456
        %v469 = vpack.c.b16 %v459, %v457
        %v470 = vpack.c.b16 %v462, %v460
        %v471 = vpack.c.b16 %v463, %v461
        %v472 = vpack.c.b16 %v466, %v464
        %v473 = vpack.c.b16 %v467, %v465
        %474 = vrot.lane.b32.xlu0 %v468, 127
        %v475 = vpop.permute.xlu0 %474
        %476 = vrot.lane.b32.xlu0 %v469, 127
        %v477 = vpop.permute.xlu0 %476
        %478 = vrot.lane.b32.xlu0 %v470, 127
        %v479 = vpop.permute.xlu0 %478
        %480 = vrot.lane.b32.xlu0 %v471, 127
        %v481 = vpop.permute.xlu0 %480
        %482 = vrot.lane.b32.xlu0 %v472, 127
        %v483 = vpop.permute.xlu0 %482
        %484 = vrot.lane.b32.xlu0 %v473, 127
        %v485 = vpop.permute.xlu0 %484
        %vm486 = vcmask 1039360
        %v487 = vsel %vm486, %v475, %v477
        %v488 = vsel %vm486, %v479, %v481
        %v489 = vsel %vm486, %v483, %v485
        %vm493 = vcmask 392192
        %v495 = vsel %vm493, %v446, 0
        %v498 = vsel %vm493, %v447, 0
        %v501 = vsel %vm493, %v448, 0
        %v504 = vsel %vm493, %v449, 0
        %506 = vmatpush.bf16.msra.mxu0 0
        %507 = vmatpush.bf16.msra.mxu0 0
        %508 = vmatpush.bf16.msra.mxu0 0
        %509 = vmatpush.bf16.msra.mxu0 0
        %510 = vmatpush.bf16.msra.mxu0 0
        %511 = vmatpush.bf16.msra.mxu0 %v489
        %512 = vmatpush.bf16.msra.mxu0 %v488
        %513 = vmatpush.bf16.msra.mxu0 %v487
        %514 = vmatmul.bf16.gmra.mxu0 %v495
        %v515 = vpop.f32.mrf.mxu0
        %v516 = vadd.f32 0.0, %v515
        %v517 = vpop.f32.mrf.mxu0
        %v518 = vadd.f32 0.0, %v517
        %519 = vmatmul.bf16.gmra.mxu0 %v498
        %v520 = vpop.f32.mrf.mxu0
        %v521 = vadd.f32 0.0, %v520
        %v522 = vpop.f32.mrf.mxu0
        %v523 = vadd.f32 0.0, %v522
        %524 = vmatmul.bf16.gmra.mxu0 %v501
        %v525 = vpop.f32.mrf.mxu0
        %v526 = vadd.f32 0.0, %v525
        %v527 = vpop.f32.mrf.mxu0
        %v528 = vadd.f32 0.0, %v527
        %529 = vmatmul.bf16.gmra.mxu0 %v504
        %v530 = vpop.f32.mrf.mxu0
        %v531 = vadd.f32 0.0, %v530
        %v532 = vpop.f32.mrf.mxu0
        %v533 = vadd.f32 0.0, %v532
        %534 = vdwg.mxu0
        %v543 = vunpack.c.l.b16 %v401
        %v544 = vunpack.c.l.b16 %v402
        %v545 = vunpack.c.l.b16 %v403
        %v546 = vunpack.c.l.b16 %v404
        %v547 = vunpack.c.l.b16 %v405
        %v548 = vunpack.c.l.b16 %v406
        %v549 = vunpack.c.l.b16 %v407
        %v550 = vunpack.c.l.b16 %v408
        %v551 = vpack.c.b16 %v544, %v543
        %v552 = vpack.c.b16 %v546, %v545
        %v553 = vpack.c.b16 %v548, %v547
        %v554 = vpack.c.b16 %v550, %v549
        %v561 = vunpack.c.l.b16 %v409
        %v562 = vunpack.c.l.b16 %v410
        %v563 = vunpack.c.l.b16 %v411
        %v564 = vunpack.c.l.b16 %v412
        %v565 = vunpack.c.l.b16 %v413
        %v566 = vunpack.c.l.b16 %v414
        %v567 = vpack.c.b16 %v562, %v561
        %v568 = vpack.c.b16 %v564, %v563
        %v569 = vpack.c.b16 %v566, %v565
        %v574 = vsel %vm493, %v551, 0
        %v577 = vsel %vm493, %v552, 0
        %v580 = vsel %vm493, %v553, 0
        %v583 = vsel %vm493, %v554, 0
        %585 = vmatpush.bf16.msra.mxu0 0
        %586 = vmatpush.bf16.msra.mxu0 0
        %587 = vmatpush.bf16.msra.mxu0 0
        %588 = vmatpush.bf16.msra.mxu0 0
        %589 = vmatpush.bf16.msra.mxu0 0
        %590 = vmatpush.bf16.msra.mxu0 %v569
        %591 = vmatpush.bf16.msra.mxu0 %v568
        %592 = vmatpush.bf16.msra.mxu0 %v567
        %593 = vmatmul.bf16.gmra.mxu0 %v574
        %v594 = vpop.f32.mrf.mxu0
        %v595 = vadd.f32 %v516, %v594
        %v596 = vpop.f32.mrf.mxu0
        %v597 = vadd.f32 %v518, %v596
        %598 = vmatmul.bf16.gmra.mxu0 %v577
        %v599 = vpop.f32.mrf.mxu0
        %v600 = vadd.f32 %v521, %v599
        %v601 = vpop.f32.mrf.mxu0
        %v602 = vadd.f32 %v523, %v601
        %603 = vmatmul.bf16.gmra.mxu0 %v580
        %v604 = vpop.f32.mrf.mxu0
        %v605 = vadd.f32 %v526, %v604
        %v606 = vpop.f32.mrf.mxu0
        %v607 = vadd.f32 %v528, %v606
        %608 = vmatmul.bf16.gmra.mxu0 %v583
        %v609 = vpop.f32.mrf.mxu0
        %v610 = vadd.f32 %v531, %v609
        %v611 = vpop.f32.mrf.mxu0
        %v612 = vadd.f32 %v533, %v611
        %613 = vdwg.mxu0
        %s614 = scalar_lea.vmem %s0, 64
        %v615 = vld [vmem:[%s614] sm:$0xf]
        %v616 = vld [vmem:[%s614 + $0x4] sm:$0xf]
        %v617 = vld [vmem:[%s614 + $0x8] sm:$0xf]
        %v618 = vld [vmem:[%s614 + $0xc] sm:$0xf]
        %v619 = vld [vmem:[%s614 + $0x10] sm:$0xf]
        %v620 = vld [vmem:[%s614 + $0x14] sm:$0xf]
        %v621 = vld [vmem:[%s614 + $0x18] sm:$0xf]
        %v622 = vld [vmem:[%s614 + $0x1c] sm:$0xf]
        %v631 = vunpack.c.l.b16 %v615
        %v632 = vunpack.c.l.b16 %v616
        %v633 = vunpack.c.l.b16 %v617
        %v634 = vunpack.c.l.b16 %v618
        %v635 = vunpack.c.l.b16 %v619
        %v636 = vunpack.c.l.b16 %v620
        %v637 = vunpack.c.l.b16 %v621
        %v638 = vunpack.c.l.b16 %v622
        %v639 = vpack.c.b16 %v632, %v631
        %v640 = vpack.c.b16 %v634, %v633
        %v641 = vpack.c.b16 %v636, %v635
        %v642 = vpack.c.b16 %v638, %v637
        %643 = vrot.lane.b32.xlu0 %v468, 123
        %v644 = vpop.permute.xlu0 %643
        %645 = vrot.lane.b32.xlu0 %v469, 123
        %v646 = vpop.permute.xlu0 %645
        %647 = vrot.lane.b32.xlu0 %v470, 123
        %v648 = vpop.permute.xlu0 %647
        %649 = vrot.lane.b32.xlu0 %v471, 123
        %v650 = vpop.permute.xlu0 %649
        %651 = vrot.lane.b32.xlu0 %v472, 123
        %v652 = vpop.permute.xlu0 %651
        %653 = vrot.lane.b32.xlu0 %v473, 123
        %v654 = vpop.permute.xlu0 %653
        %vm655 = vcmask 1006592
        %v656 = vsel %vm655, %v644, %v646
        %v657 = vsel %vm655, %v648, %v650
        %v658 = vsel %vm655, %v652, %v654
        %v663 = vsel %vm493, %v639, 0
        %v666 = vsel %vm493, %v640, 0
        %v669 = vsel %vm493, %v641, 0
        %v672 = vsel %vm493, %v642, 0
        %674 = vmatpush.bf16.msra.mxu0 0
        %675 = vmatpush.bf16.msra.mxu0 0
        %676 = vmatpush.bf16.msra.mxu0 0
        %677 = vmatpush.bf16.msra.mxu0 0
        %678 = vmatpush.bf16.msra.mxu0 0
        %679 = vmatpush.bf16.msra.mxu0 %v658
        %680 = vmatpush.bf16.msra.mxu0 %v657
        %681 = vmatpush.bf16.msra.mxu0 %v656
        %682 = vmatmul.bf16.gmra.mxu0 %v663
        %v683 = vpop.f32.mrf.mxu0
        %v684 = vadd.f32 0.0, %v683
        %v685 = vpop.f32.mrf.mxu0
        %v686 = vadd.f32 0.0, %v685
        %687 = vmatmul.bf16.gmra.mxu0 %v666
        %v688 = vpop.f32.mrf.mxu0
        %v689 = vadd.f32 0.0, %v688
        %v690 = vpop.f32.mrf.mxu0
        %v691 = vadd.f32 0.0, %v690
        %692 = vmatmul.bf16.gmra.mxu0 %v669
        %v693 = vpop.f32.mrf.mxu0
        %v694 = vadd.f32 0.0, %v693
        %v695 = vpop.f32.mrf.mxu0
        %v696 = vadd.f32 0.0, %v695
        %697 = vmatmul.bf16.gmra.mxu0 %v672
        %v698 = vpop.f32.mrf.mxu0
        %v699 = vadd.f32 0.0, %v698
        %v700 = vpop.f32.mrf.mxu0
        %v701 = vadd.f32 0.0, %v700
        %702 = vdwg.mxu0
        %v703 = vadd.f32 %v595, %v684
        %v704 = vadd.f32 %v597, %v686
        %v705 = vadd.f32 %v600, %v689
        %v706 = vadd.f32 %v602, %v691
        %v707 = vadd.f32 %v605, %v694
        %v708 = vadd.f32 %v607, %v696
        %v709 = vadd.f32 %v610, %v699
        %v710 = vadd.f32 %v612, %v701
        %s711 = scalar_lea.vmem %s0, 96
        %v712 = vld [vmem:[%s711] sm:$0xf]
        %v713 = vld [vmem:[%s711 + $0x4] sm:$0xf]
        %v714 = vld [vmem:[%s711 + $0x8] sm:$0xf]
        %v715 = vld [vmem:[%s711 + $0xc] sm:$0xf]
        %v716 = vld [vmem:[%s711 + $0x10] sm:$0xf]
        %v717 = vld [vmem:[%s711 + $0x14] sm:$0xf]
        %v718 = vld [vmem:[%s711 + $0x18] sm:$0xf]
        %v719 = vld [vmem:[%s711 + $0x1c] sm:$0xf]
        %v728 = vunpack.c.l.b16 %v712
        %v729 = vunpack.c.l.b16 %v713
        %v730 = vunpack.c.l.b16 %v714
        %v731 = vunpack.c.l.b16 %v715
        %v732 = vunpack.c.l.b16 %v716
        %v733 = vunpack.c.l.b16 %v717
        %v734 = vunpack.c.l.b16 %v718
        %v735 = vunpack.c.l.b16 %v719
        %v736 = vpack.c.b16 %v729, %v728
        %v737 = vpack.c.b16 %v731, %v730
        %v738 = vpack.c.b16 %v733, %v732
        %v739 = vpack.c.b16 %v735, %v734
        %740 = vrot.lane.b32.xlu0 %v468, 122
        %v741 = vpop.permute.xlu0 %740
        %742 = vrot.lane.b32.xlu0 %v469, 122
        %v743 = vpop.permute.xlu0 %742
        %744 = vrot.lane.b32.xlu0 %v470, 122
        %v745 = vpop.permute.xlu0 %744
        %746 = vrot.lane.b32.xlu0 %v471, 122
        %v747 = vpop.permute.xlu0 %746
        %748 = vrot.lane.b32.xlu0 %v472, 122
        %v749 = vpop.permute.xlu0 %748
        %750 = vrot.lane.b32.xlu0 %v473, 122
        %v751 = vpop.permute.xlu0 %750
        %vm752 = vcmask 998400
        %v753 = vsel %vm752, %v741, %v743
        %v754 = vsel %vm752, %v745, %v747
        %v755 = vsel %vm752, %v749, %v751
        %v760 = vsel %vm493, %v736, 0
        %v763 = vsel %vm493, %v737, 0
        %v766 = vsel %vm493, %v738, 0
        %v769 = vsel %vm493, %v739, 0
        %771 = vmatpush.bf16.msra.mxu0 0
        %772 = vmatpush.bf16.msra.mxu0 0
        %773 = vmatpush.bf16.msra.mxu0 0
        %774 = vmatpush.bf16.msra.mxu0 0
        %775 = vmatpush.bf16.msra.mxu0 0
        %776 = vmatpush.bf16.msra.mxu0 %v755
        %777 = vmatpush.bf16.msra.mxu0 %v754
        %778 = vmatpush.bf16.msra.mxu0 %v753
        %779 = vmatmul.bf16.gmra.mxu0 %v760
        %v780 = vpop.f32.mrf.mxu0
        %v781 = vadd.f32 0.0, %v780
        %v782 = vpop.f32.mrf.mxu0
        %v783 = vadd.f32 0.0, %v782
        %784 = vmatmul.bf16.gmra.mxu0 %v763
        %v785 = vpop.f32.mrf.mxu0
        %v786 = vadd.f32 0.0, %v785
        %v787 = vpop.f32.mrf.mxu0
        %v788 = vadd.f32 0.0, %v787
        %789 = vmatmul.bf16.gmra.mxu0 %v766
        %v790 = vpop.f32.mrf.mxu0
        %v791 = vadd.f32 0.0, %v790
        %v792 = vpop.f32.mrf.mxu0
        %v793 = vadd.f32 0.0, %v792
        %794 = vmatmul.bf16.gmra.mxu0 %v769
        %v795 = vpop.f32.mrf.mxu0
        %v796 = vadd.f32 0.0, %v795
        %v797 = vpop.f32.mrf.mxu0
        %v798 = vadd.f32 0.0, %v797
        %799 = vdwg.mxu0
        %v800 = vadd.f32 %v703, %v781
        %v801 = vadd.f32 %v704, %v783
        %v802 = vadd.f32 %v705, %v786
        %v803 = vadd.f32 %v706, %v788
        %v804 = vadd.f32 %v707, %v791
        %v805 = vadd.f32 %v708, %v793
        %v806 = vadd.f32 %v709, %v796
        %v807 = vadd.f32 %v710, %v798
        %v808 = vld [vmem:[%s1] sm:$0xff]
        %v809 = vld [vmem:[%s1 + $0x8] sm:$0xff]
        %v810 = vld [vmem:[%s1 + $0x10] sm:$0xff]
        %v811 = vld [vmem:[%s1 + $0x18] sm:$0xff]
        %v812 = vld [vmem:[%s1 + $0x20] sm:$0xff]
        %v813 = vld [vmem:[%s1 + $0x28] sm:$0xff]
        %v814 = vld [vmem:[%s1 + $0x30] sm:$0xff]
        %v815 = vld [vmem:[%s1 + $0x38] sm:$0xff]
        %817 = vset.pattern.permute.xlu0 0
        %818 = vperm.xlu0 %817, %v808
        %v819 = vpop.permute.xlu0 %818
        %822 = vset.pattern.permute.xlu0 0
        %823 = vperm.xlu0 %822, %v809
        %v824 = vpop.permute.xlu0 %823
        %827 = vset.pattern.permute.xlu0 0
        %828 = vperm.xlu0 %827, %v810
        %v829 = vpop.permute.xlu0 %828
        %832 = vset.pattern.permute.xlu0 0
        %833 = vperm.xlu0 %832, %v811
        %v834 = vpop.permute.xlu0 %833
        %837 = vset.pattern.permute.xlu0 0
        %838 = vperm.xlu0 %837, %v812
        %v839 = vpop.permute.xlu0 %838
        %842 = vset.pattern.permute.xlu0 0
        %843 = vperm.xlu0 %842, %v813
        %v844 = vpop.permute.xlu0 %843
        %847 = vset.pattern.permute.xlu0 0
        %848 = vperm.xlu0 %847, %v814
        %v849 = vpop.permute.xlu0 %848
        %852 = vset.pattern.permute.xlu0 0
        %853 = vperm.xlu0 %852, %v815
        %v854 = vpop.permute.xlu0 %853
        %v856 = vadd.f32 %v800, %v819
        %v857 = vadd.f32 %v801, %v824
        %v858 = vadd.f32 %v802, %v829
        %v859 = vadd.f32 %v803, %v834
        %v860 = vadd.f32 %v804, %v839
        %v861 = vadd.f32 %v805, %v844
        %v862 = vadd.f32 %v806, %v849
        %v863 = vadd.f32 %v807, %v854
        %v864 = vpack.c.bf16 %v856, %v856
        %v865 = vpack.c.bf16 %v857, %v857
        %v866 = vpack.c.bf16 %v858, %v858
        %v867 = vpack.c.bf16 %v859, %v859
        %v868 = vpack.c.bf16 %v860, %v860
        %v869 = vpack.c.bf16 %v861, %v861
        %v870 = vpack.c.bf16 %v862, %v862
        %v871 = vpack.c.bf16 %v863, %v863
        %872 = vst [vmem:[%s375] sm:$0xf] %v864
        %873 = vst [vmem:[%s375 + $0x4] sm:$0xf] %v865
        %874 = vst [vmem:[%s375 + $0x8] sm:$0xf] %v866
        %875 = vst [vmem:[%s375 + $0xc] sm:$0xf] %v867
        %876 = vst [vmem:[%s375 + $0x10] sm:$0xf] %v868
        %877 = vst [vmem:[%s375 + $0x14] sm:$0xf] %v869
        %878 = vst [vmem:[%s375 + $0x18] sm:$0xf] %v870
        %879 = vst [vmem:[%s375 + $0x1c] sm:$0xf] %v871
        %p880 = scmp.lt.s32.totalorder %s19, 1
        %s881 = scalar_select %p880, %s19, 1
        %p882 = scmp.lt.s32.totalorder %s20, 0
        %s883 = scalar_select %p882, %s20, 0
        %s884 = smul.addr %s881, 8
        %s885 = sadd.s32 %s883, %s884
        %s886 = smul.addr %s885, 4
        %s887 = scalar_lea.vmem %s4, %s886
        // Predicated region
        $region119: #{_lambda_.1} parent=109 // pred_check
          %p888 = pneg %p147
        $region120: #{_lambda_.1} parent=109 // pred_check_branch
          %890 = sbr.rel (%p888) target = $region122
        $region121: #{_lambda_.1} parent=109 // pred_region
          _
        $region122: #{_lambda_.1} parent=109 // pred_fallthru
          _
      $region110: #{_lambda_.1} parent=5 // pred_fallthru
        _
      %p891 = scmp.le.s32.totalorder 2, %s10
      // Predicated region
      $region123: #{_lambda_.1} parent=5 // pred_check
        %p892 = pneg %p891
      $region124: #{_lambda_.1} parent=5 // pred_check_branch
        %894 = sbr.rel (%p892) target = $region126
      $region125: #{_lambda_.1} parent=5 // pred_region
        %s895 = ssub.s32 %s10, 2
        // Predicated region
        $region127: #{_lambda_.1} parent=125 // pred_check
          %p896 = pneg %p153
        $region128: #{_lambda_.1} parent=125 // pred_check_branch
          %898 = sbr.rel (%p896) target = $region130
        $region129: #{_lambda_.1} parent=125 // pred_region
          %p899 = scmp.lt.s32.totalorder %s21, 1
          %s900 = scalar_select %p899, %s21, 1
          %p901 = scmp.lt.s32.totalorder %s22, 0
          %s902 = scalar_select %p901, %s22, 0
          %s903 = smul.addr %s900, 8
          %s904 = sadd.s32 %s902, %s903
          %s905 = smul.addr %s904, 4
          %s906 = scalar_lea.vmem %s4, %s905
        $region130: #{_lambda_.1} parent=125 // pred_fallthru
          _
      $region126: #{_lambda_.1} parent=5 // pred_fallthru
        _
    $region6: #{_lambda_.1} parent=1 // loop_footer
      %s14 = sadd.s32 1, %s10
    $region7: #{_lambda_.1} parent=1 // loop_footer_branch
      %9 = sbr.rel target = $region3
    $region8: #{_lambda_.1} parent=1 // loop_exit
      _

</llo_original>
